<compile_context>
chip_gen: v7x
topology: tpu7x:2x2x1
jax: 0.10.0
libtpu: 0.0.40
codegen_flags: <defaults>
</compile_context>

<pallas_src>
import jax
import jax.numpy as jnp
import numpy as np
from jax.experimental import pallas as pl
from jax.experimental.pallas import tpu as pltpu


def _round_up(x, m):
    return ((x + m - 1) // m) * m


def _vmem_capacity_bytes():
    """Per-core VMEM capacity; conservative (v7x) fallback if the query is unavailable."""
    try:
        info = pltpu.get_tpu_info()
        cap = int(getattr(info, "vmem_capacity_bytes", 0))
        if cap > 0:
            return cap
    except Exception:
        pass
    return 64 << 20


def _choose_tm(n_pad, k_pad, capacity):
    """Pick the row tile TM from the VMEM budget, accounting for the resident bf16 h."""
    budget = int(capacity * 0.75)
    # resident terms (independent of TM): h (bf16, <=2 buffers worst case), a2 row, slack
    resident = 2 * n_pad * k_pad * 2 + 2 * n_pad * 4 + (1 << 20)
    avail = budget - resident
    # per tile-row: adj int8 double buffer + ~4 f32 S/p temporaries + a12 block + f32 out buffers
    per_row = 2 * n_pad + 16 * n_pad + 2 * 128 * 4 + 2 * k_pad * 4
    tm = avail // per_row if avail > 0 else 32
    tm = (tm // 32) * 32
    return int(max(32, min(512, tm)))


def _pass2_vmem_bytes(tm, n_pad, k_pad, capacity, h_buffers):
    need = (h_buffers * n_pad * k_pad * 2     # resident h (bf16)
            + 2 * n_pad * 4                   # a2 row
            + 2 * tm * n_pad                  # adj int8 double buffer
            + 2 * tm * 128 * 4                # a12 blocks
            + 2 * tm * k_pad * 4              # output double buffer
            + 4 * tm * n_pad * 4              # S / p / mask temporaries (headroom)
            + (2 << 20))
    return int(min(max(need, 8 << 20), int(capacity * 0.85)))


# ---------------------------------------------------------------------------
# Pass 1: dense feature transform + fused (lane-dense) attention-logit matmul
# ---------------------------------------------------------------------------
def sat_linear_kernel(x_ref, w_ref, b_ref, w12_ref, b12_ref, h_ref, a12_ref):
    h = jnp.dot(x_ref[...], w_ref[...], preferred_element_type=jnp.float32) + b_ref[...]
    a12_ref[...] = jnp.dot(jnp.abs(h), w12_ref[...],
                           preferred_element_type=jnp.float32) + b12_ref[...]   # (TM, 128)
    h_ref[...] = h.astype(h_ref.dtype)                                          # bf16 store


# ---------------------------------------------------------------------------
# Pass 2: masked (sparse-pattern) row softmax + signed sparse.mm, per row tile
# ---------------------------------------------------------------------------
def sat_attention_kernel(adj_ref, a12_ref, a2row_ref, h_ref, o_ref):
    adj = adj_ref[...]                                   # (TM, n) int8 in {-1,0,+1}; 0 == no entry
    a1 = a12_ref[:, 0:1]                                 # (TM, 1) slice of the lane-dense block
    s = a1 + a2row_ref[...]                              # (TM,1)+(1,n) broadcast -> (TM, n)
    neg_big = jnp.float32(-1e30)
    s = jnp.where(adj != 0, s, neg_big)                  # mask derived from int8 adjacency
    row_max = jnp.max(s, axis=1, keepdims=True)
    row_max = jnp.where(row_max > neg_big * 0.5, row_max, 0.0)   # keep empty rows finite
    p = jnp.exp(s - row_max)                             # f32; exactly 0 off-pattern (underflow)
    denom = jnp.sum(p, axis=1, keepdims=True)            # (TM, 1)
    # Signed attention weights in bf16 for a native-rate MXU contraction (f32 accumulation).
    pa = (p * adj.astype(jnp.float32)).astype(jnp.bfloat16)
    out_unnorm = jnp.dot(pa, h_ref[...], preferred_element_type=jnp.float32)     # (TM, K)
    # Deferred softmax normalization: scale the (TM, K) result rows, not the (TM, n) tile.
    d = jnp.where(denom > 0.0, denom, 1.0)
    inv = pl.reciprocal(d, approx=True)                  # EUP vrcp (free slot)
    inv = inv * (2.0 - d * inv)                          # one Newton step -> f32-accurate
    o_ref[...] = out_unnorm * inv


# ---------------------------------------------------------------------------
# Wrapper
# ---------------------------------------------------------------------------
def sat_layer_orientated(features, adj_dense, params, *, tm=None):
    """features: (n, m) f32; adj_dense: (n, n) signed orientation matrix (0 == no stored entry)."""
    features = jnp.asarray(features, jnp.float32)
    adj_dense = jnp.asarray(adj_dense, jnp.float32)
    n, m = features.shape
    k = params["w_layer"].shape[1]

    cap = _vmem_capacity_bytes()
    k_pad = _round_up(k, 128)                  # lane-dense output / MXU result columns
    n_128 = _round_up(n, 128)
    if tm is None:
        tm = _choose_tm(n_128, k_pad, cap)
    tm = int(min(max(32, (tm // 32) * 32), n_128))   # multiple of 32 (int8 sublane packing)
    n_pad = _round_up(n_128, tm)
    grid = (n_pad // tm,)

    # zero-pad inputs / params (padded rows & cols carry adj == 0 => contribute nothing)
    x_p = jnp.zeros((n_pad, m), jnp.float32).at[:n, :].set(features)
    adj_i8 = jnp.zeros((n_pad, n_pad), jnp.int8).at[:n, :n].set(adj_dense.astype(jnp.int8))
    w_p = jnp.zeros((m, k_pad), jnp.float32).at[:, :k].set(params["w_layer"])
    b_p = jnp.zeros((1, k_pad), jnp.float32).at[:, :k].set(params["b_layer"])
    # Lane-dense logit weights: cols 0/1 carry a_1 / a_2, the rest are zero padding.
    w12 = jnp.zeros((k_pad, 128), jnp.float32)
    w12 = w12.at[:k, 0:1].set(params["w_a1"]).at[:k, 1:2].set(params["w_a2"])
    b12 = jnp.zeros((1, 128), jnp.float32)
    b12 = b12.at[:, 0:1].set(params["b_a1"]).at[:, 1:2].set(params["b_a2"])

    # ---- pass 1: h (bf16) and fused lane-dense attention logits ----
    h, a12 = pl.pallas_call(
        sat_linear_kernel,
        out_shape=(jax.ShapeDtypeStruct((n_pad, k_pad), jnp.bfloat16),
                   jax.ShapeDtypeStruct((n_pad, 128), jnp.float32)),
        grid=grid,
        in_specs=[pl.BlockSpec((tm, m), lambda i: (i, 0)),
                  pl.BlockSpec((m, k_pad), lambda i: (0, 0)),
                  pl.BlockSpec((1, k_pad), lambda i: (0, 0)),
                  pl.BlockSpec((k_pad, 128), lambda i: (0, 0)),
                  pl.BlockSpec((1, 128), lambda i: (0, 0))],
        out_specs=(pl.BlockSpec((tm, k_pad), lambda i: (i, 0)),
                   pl.BlockSpec((tm, 128), lambda i: (i, 0))),
        compiler_params=pltpu.CompilerParams(dimension_semantics=("parallel",)),
    )(x_p, w_p, b_p, w12, b12)

    # Transpose a2 ONCE outside the row loop (tiny (n,1) slab, plain XLA op).
    a2_row = a12[:, 1:2].T                 # (1, n_pad), lane-resident row

    # ---- pass 2: masked softmax over adj's nonzero pattern + signed sparse.mm ----
    def _run_pass2(buffer_constants):
        const_kw = {"pipeline_mode": pl.Buffered(1)} if buffer_constants else {}
        call = pl.pallas_call(
            sat_attention_kernel,
            out_shape=jax.ShapeDtypeStruct((n_pad, k_pad), jnp.float32),
            grid=grid,
            in_specs=[
                pl.BlockSpec((tm, n_pad), lambda i: (i, 0)),                   # adj int8, streamed
                pl.BlockSpec((tm, 128), lambda i: (i, 0)),                     # a12 (col 0 = a1)
                pl.BlockSpec((1, n_pad), lambda i: (0, 0), **const_kw),        # a2 row, constant
                pl.BlockSpec((n_pad, k_pad), lambda i: (0, 0), **const_kw),    # h bf16, resident
            ],
            out_specs=pl.BlockSpec((tm, k_pad), lambda i: (i, 0)),
            compiler_params=pltpu.CompilerParams(
                dimension_semantics=("parallel",),
                vmem_limit_bytes=_pass2_vmem_bytes(tm, n_pad, k_pad, cap,
                                                   1 if buffer_constants else 2)),
        )
        return call(adj_i8, a12, a2_row, h)

    try:
        out = jax.block_until_ready(_run_pass2(True))
    except Exception:
        # pipeline_mode=pl.Buffered(1) not supported by this JAX build: fall back to defaults.
        out = _run_pass2(False)

    return out[:n, :k]


# ---------------------------------------------------------------------------
# Pure-JAX reference of the same semantics (for validation)
# ---------------------------------------------------------------------------
def reference_forward(features, adj_dense, params):
    h = features @ params["w_layer"] + params["b_layer"]
    habs = jnp.abs(h)
    a1 = habs @ params["w_a1"] + params["b_a1"]
    a2 = habs @ params["w_a2"] + params["b_a2"]
    s = a1 + a2.T
    mask = adj_dense != 0
    s = jnp.where(mask, s, -jnp.inf)
    m = jnp.max(s, axis=1, keepdims=True)
    m = jnp.where(jnp.isfinite(m), m, 0.0)
    p = jnp.where(mask, jnp.exp(s - m), 0.0)
    denom = jnp.sum(p, axis=1, keepdims=True)
    attn = p / jnp.where(denom > 0, denom, 1.0)
    return (attn * adj_dense) @ h


def init_params(key, input_size, output_size):
    """Deterministic nn.Linear-style init: U(-1/sqrt(fan_in), 1/sqrt(fan_in))."""
    k_w, k_b, k_w1, k_b1, k_w2, k_b2 = jax.random.split(key, 6)
    bl = 1.0 / np.sqrt(input_size)
    ba = 1.0 / np.sqrt(output_size)
    return {
        # stored transposed: (in, out)
        "w_layer": jax.random.uniform(k_w, (input_size, output_size), jnp.float32, -bl, bl),
        "b_layer": jax.random.uniform(k_b, (1, output_size), jnp.float32, -bl, bl),
        "w_a1": jax.random.uniform(k_w1, (output_size, 1), jnp.float32, -ba, ba),
        "b_a1": jax.random.uniform(k_b1, (1, 1), jnp.float32, -ba, ba),
        "w_a2": jax.random.uniform(k_w2, (output_size, 1), jnp.float32, -ba, ba),
        "b_a2": jax.random.uniform(k_b2, (1, 1), jnp.float32, -ba, ba),
    }


if __name__ == "__main__":
    input_size = 8    # m
    output_size = 32  # k

    root = jax.random.PRNGKey(0)
    # case 0: single row block (auto TM); case 1: multi-block grid with TM forced to 32
    for case, (n, tm) in enumerate([(16, None), (44, 32)]):
        key = jax.random.fold_in(root, case)
        k_feat, k_mask, k_sign, k_params = jax.random.split(key, 4)

        features = jax.random.normal(k_feat, (n, input_size), jnp.float32)

        # Sparse signed orientation matrix as a dense signed array (0 == no stored entry).
        mask = (jax.random.uniform(k_mask, (n, n)) < 0.4).astype(jnp.float32)
        mask = jnp.maximum(mask, jnp.eye(n, dtype=jnp.float32))  # >=1 entry per row
        signs = jnp.where(jax.random.uniform(k_sign, (n, n)) < 0.5, -1.0, 1.0).astype(jnp.float32)
        adj_dense = mask * signs

        params = init_params(k_params, input_size, output_size)

        out = jax.block_until_ready(sat_layer_orientated(features, adj_dense, params, tm=tm))
        ref = jax.block_until_ready(reference_forward(features, adj_dense, params))
        # bf16 h + bf16 signed-attention matmul: validate at bf16-appropriate tolerance
        np.testing.assert_allclose(np.asarray(out), np.asarray(ref), rtol=2e-2, atol=2e-2)

    # TODO(synk): for very large / genuinely sparse boundary operators, add a column-tiled
    # online-softmax (flash-style) pass 2 with scalar-prefetch block-skipping so the resident-h
    # requirement and the dense n^2 adjacency stream both disappear.
    print("KERNEL_OK")
</pallas_src>

<mosaic_0001>
module attributes {stable_mosaic.version = 11 : i64} {
  func.func @sat_linear_kernel(%arg0: i32, %arg1: memref<128x8xf32, #tpu.memory_space<vmem>>, %arg2: memref<8x128xf32, #tpu.memory_space<vmem>>, %arg3: memref<1x128xf32, #tpu.memory_space<vmem>>, %arg4: memref<128x128xf32, #tpu.memory_space<vmem>>, %arg5: memref<1x128xf32, #tpu.memory_space<vmem>>, %arg6: memref<128x128xbf16, #tpu.memory_space<vmem>>, %arg7: memref<128x128xf32, #tpu.memory_space<vmem>>) attributes {dimension_semantics = [#tpu.dimension_semantics<parallel>], iteration_bounds = array<i64: 1>, scalar_prefetch = 0 : i64, scratch_operands = 0 : i64, tpu.core_type = #tpu.core_type<tc>, window_params = [{transform_indices = @transform_0, window_bounds = array<i64: 128, 8>}, {pipeline_mode = #tpu.pipeline_mode<synchronous>, transform_indices = @transform_1, window_bounds = array<i64: 8, 128>}, {pipeline_mode = #tpu.pipeline_mode<synchronous>, transform_indices = @transform_2, window_bounds = array<i64: 1, 128>}, {pipeline_mode = #tpu.pipeline_mode<synchronous>, transform_indices = @transform_3, window_bounds = array<i64: 128, 128>}, {pipeline_mode = #tpu.pipeline_mode<synchronous>, transform_indices = @transform_4, window_bounds = array<i64: 1, 128>}, {transform_indices = @transform_5, window_bounds = array<i64: 128, 128>}, {transform_indices = @transform_6, window_bounds = array<i64: 128, 128>}]} {
    %c0 = arith.constant 0 : index
    %c0_0 = arith.constant 0 : index
    %0 = vector.load %arg1[%c0, %c0_0] : memref<128x8xf32, #tpu.memory_space<vmem>>, vector<128x8xf32>
    %c0_1 = arith.constant 0 : index
    %c0_2 = arith.constant 0 : index
    %1 = vector.load %arg2[%c0_1, %c0_2] : memref<8x128xf32, #tpu.memory_space<vmem>>, vector<8x128xf32>
    %cst = arith.constant dense<0.000000e+00> : vector<128x128xf32>
    %2 = tpu.matmul %0, %1, %cst {dimension_numbers = #tpu.dot_dimension_numbers<[1], [0], [0], [1], [0, 0, 1, 1], [], []>} : vector<128x8xf32>, vector<8x128xf32>, vector<128x128xf32> -> vector<128x128xf32>
    %c0_3 = arith.constant 0 : index
    %c0_4 = arith.constant 0 : index
    %3 = vector.load %arg3[%c0_3, %c0_4] : memref<1x128xf32, #tpu.memory_space<vmem>>, vector<1x128xf32>
    %4 = vector.broadcast %3 : vector<1x128xf32> to vector<128x128xf32>
    %5 = arith.addf %2, %4 : vector<128x128xf32>
    %6 = math.absf %5 : vector<128x128xf32>
    %c0_5 = arith.constant 0 : index
    %c0_6 = arith.constant 0 : index
    %7 = vector.load %arg4[%c0_5, %c0_6] : memref<128x128xf32, #tpu.memory_space<vmem>>, vector<128x128xf32>
    %cst_7 = arith.constant dense<0.000000e+00> : vector<128x128xf32>
    %8 = tpu.matmul %6, %7, %cst_7 {dimension_numbers = #tpu.dot_dimension_numbers<[1], [0], [0], [1], [0, 0, 1, 1], [], []>} : vector<128x128xf32>, vector<128x128xf32>, vector<128x128xf32> -> vector<128x128xf32>
    %c0_8 = arith.constant 0 : index
    %c0_9 = arith.constant 0 : index
    %9 = vector.load %arg5[%c0_8, %c0_9] : memref<1x128xf32, #tpu.memory_space<vmem>>, vector<1x128xf32>
    %10 = vector.broadcast %9 : vector<1x128xf32> to vector<128x128xf32>
    %11 = arith.addf %8, %10 : vector<128x128xf32>
    %c0_10 = arith.constant 0 : index
    %c0_11 = arith.constant 0 : index
    %12 = vector.load %arg7[%c0_10, %c0_11] : memref<128x128xf32, #tpu.memory_space<vmem>>, vector<128x128xf32>
    tpu.vector_store %arg7[%c0_10, %c0_11], %11 {strides = array<i32>} : memref<128x128xf32, #tpu.memory_space<vmem>>, vector<128x128xf32>,
    %13 = arith.truncf %5 : vector<128x128xf32> to vector<128x128xbf16>
    %c0_12 = arith.constant 0 : index
    %c0_13 = arith.constant 0 : index
    %14 = vector.load %arg6[%c0_12, %c0_13] : memref<128x128xbf16, #tpu.memory_space<vmem>>, vector<128x128xbf16>
    tpu.vector_store %arg6[%c0_12, %c0_13], %13 {strides = array<i32>} : memref<128x128xbf16, #tpu.memory_space<vmem>>, vector<128x128xbf16>,
    return
  }
  func.func @transform_0(%arg0: i32) -> (i32, i32) {
    %c0_i32 = arith.constant 0 : i32
    %c0_i32_0 = arith.constant 0 : i32
    return %arg0, %c0_i32 : i32, i32
  }
  func.func @transform_1(%arg0: i32) -> (i32, i32) {
    %c0_i32 = arith.constant 0 : i32
    %c0_i32_0 = arith.constant 0 : i32
    %c0_i32_1 = arith.constant 0 : i32
    return %c0_i32, %c0_i32_0 : i32, i32
  }
  func.func @transform_2(%arg0: i32) -> (i32, i32) {
    %c0_i32 = arith.constant 0 : i32
    %c0_i32_0 = arith.constant 0 : i32
    %c0_i32_1 = arith.constant 0 : i32
    return %c0_i32, %c0_i32_0 : i32, i32
  }
  func.func @transform_3(%arg0: i32) -> (i32, i32) {
    %c0_i32 = arith.constant 0 : i32
    %c0_i32_0 = arith.constant 0 : i32
    %c0_i32_1 = arith.constant 0 : i32
    return %c0_i32, %c0_i32_0 : i32, i32
  }
  func.func @transform_4(%arg0: i32) -> (i32, i32) {
    %c0_i32 = arith.constant 0 : i32
    %c0_i32_0 = arith.constant 0 : i32
    %c0_i32_1 = arith.constant 0 : i32
    return %c0_i32, %c0_i32_0 : i32, i32
  }
  func.func @transform_5(%arg0: i32) -> (i32, i32) {
    %c0_i32 = arith.constant 0 : i32
    %c0_i32_0 = arith.constant 0 : i32
    return %arg0, %c0_i32 : i32, i32
  }
  func.func @transform_6(%arg0: i32) -> (i32, i32) {
    %c0_i32 = arith.constant 0 : i32
    %c0_i32_0 = arith.constant 0 : i32
    return %arg0, %c0_i32 : i32, i32
  }
}

</mosaic_0001>

<llo_original>
// kernel: tpu_custom_call.1
$region0: #{tpu_custom_call.1}
  #allocation0 [shape = 'u32[]', space=smem, size = 0x4, offset = 0x4, fixed_abs, tag = 'smem constant byte address 0x4 - core index']
  #allocation1 [shape = 'u32[144,128]{1,0:T(1,128)}', space=vmem, size = 0x12000, scoped, tag = 'internal scratch']
  %s0 = inlined_call_operand.vmem [shape: f32[128,8], index: 0, kind: input, shape index: {}]
  %s1 = inlined_call_operand.vmem [shape: f32[8,128], index: 1, kind: input, shape index: {}]
  %s2 = inlined_call_operand.vmem [shape: f32[1,128], index: 2, kind: input, shape index: {}]
  %s3 = inlined_call_operand.vmem [shape: f32[128,128], index: 3, kind: input, shape index: {}]
  %s4 = inlined_call_operand.vmem [shape: f32[1,128], index: 4, kind: input, shape index: {}]
  %s5 = inlined_call_operand.hbm [shape: bf16[128,128], index: 5, kind: output, shape index: {0}]
  %s6 = inlined_call_operand.hbm [shape: f32[128,128], index: 6, kind: output, shape index: {1}]
  %7 = xla_tuple %s5, %s6
  %s8 = sld [smem:[#allocation0]]
  $region38: #{tpu_custom_call.1} parent=0
    _
  %s10 = ssub.s32 1, %s8
  %s11 = scalar_select 0, %s10, %s8
  $region1: #{tpu_custom_call.1} parent=0
    #allocation2 [shape = 'u8[32768]{0}', space=vmem, size = 0x8000, scoped, tag = 'output window, operand 0, single buffered']
    #allocation3 [shape = 's32[1]{0}', space=sflag, size = 0x4, scoped, tag = 'scoped memory for tpu_custom_call.1']
    #allocation4 [shape = 'u8[65536]{0}', space=vmem, size = 0x10000, scoped, tag = 'output window, operand 1, single buffered']
    #allocation5 [shape = 's32[1]{0}', space=sflag, size = 0x4, scoped, tag = 'scoped memory for tpu_custom_call.1']
    %12 = vsyncpa [#allocation3], 0
    %13 = vsyncpa [#allocation5], 0
    // Predicated region
    $region2: #{tpu_custom_call.1} parent=1 // pred_check
      _
    $region3: #{tpu_custom_call.1} parent=1 // pred_check_branch
      %15 = sbr.rel (0) target = $region5
    $region4: #{tpu_custom_call.1} parent=1 // pred_region
      _
    $region5: #{tpu_custom_call.1} parent=1 // pred_fallthru
      _
    // Predicated region
    $region6: #{tpu_custom_call.1} parent=1 // pred_check
      _
    $region7: #{tpu_custom_call.1} parent=1 // pred_check_branch
      %17 = sbr.rel (0) target = $region9
    $region8: #{tpu_custom_call.1} parent=1 // pred_region
      _
    $region9: #{tpu_custom_call.1} parent=1 // pred_fallthru
      _
    // Predicated region
    $region10: #{tpu_custom_call.1} parent=1 // pred_check
      _
    $region11: #{tpu_custom_call.1} parent=1 // pred_check_branch
      %19 = sbr.rel (0) target = $region13
    $region12: #{tpu_custom_call.1} parent=1 // pred_region
      _
    $region13: #{tpu_custom_call.1} parent=1 // pred_fallthru
      _
    // Predicated region
    $region14: #{tpu_custom_call.1} parent=1 // pred_check
      _
    $region15: #{tpu_custom_call.1} parent=1 // pred_check_branch
      %21 = sbr.rel (0) target = $region17
    $region16: #{tpu_custom_call.1} parent=1 // pred_region
      _
    $region17: #{tpu_custom_call.1} parent=1 // pred_fallthru
      _
    // Predicated region
    $region18: #{tpu_custom_call.1} parent=1 // pred_check
      _
    $region19: #{tpu_custom_call.1} parent=1 // pred_check_branch
      %23 = sbr.rel (0) target = $region21
    $region20: #{tpu_custom_call.1} parent=1 // pred_region
      _
    $region21: #{tpu_custom_call.1} parent=1 // pred_fallthru
      _
    %v24 = vld [vmem:[%s0] sm:$0xff]
    %v25 = vld [vmem:[%s0 + $0x8] sm:$0xff]
    %v26 = vld [vmem:[%s0 + $0x10] sm:$0xff]
    %v27 = vld [vmem:[%s0 + $0x18] sm:$0xff]
    %v28 = vld [vmem:[%s0 + $0x20] sm:$0xff]
    %v29 = vld [vmem:[%s0 + $0x28] sm:$0xff]
    %v30 = vld [vmem:[%s0 + $0x30] sm:$0xff]
    %v31 = vld [vmem:[%s0 + $0x38] sm:$0xff]
    %v32 = vld [vmem:[%s0 + $0x40] sm:$0xff]
    %v33 = vld [vmem:[%s0 + $0x48] sm:$0xff]
    %v34 = vld [vmem:[%s0 + $0x50] sm:$0xff]
    %v35 = vld [vmem:[%s0 + $0x58] sm:$0xff]
    %v36 = vld [vmem:[%s0 + $0x60] sm:$0xff]
    %v37 = vld [vmem:[%s0 + $0x68] sm:$0xff]
    %v38 = vld [vmem:[%s0 + $0x70] sm:$0xff]
    %v39 = vld [vmem:[%s0 + $0x78] sm:$0xff]
    %v40 = vld [vmem:[%s1] sm:$0xff]
    %v41 = vld [vmem:[%s2] sm:$0x1]
    %v43 = vlaneseq
    %v44 = vshrl.u32 %v43, 7
    %v45 = vsub.s32 0, %v44
    %v46 = vrot.slane %v41, %v45
    %vm48 = vcmask 64512
    %v50 = vsel %vm48, %v24, 0
    %v53 = vsel %vm48, %v25, 0
    %v56 = vsel %vm48, %v26, 0
    %v59 = vsel %vm48, %v27, 0
    %v62 = vsel %vm48, %v28, 0
    %v65 = vsel %vm48, %v29, 0
    %v68 = vsel %vm48, %v30, 0
    %v71 = vsel %vm48, %v31, 0
    %v74 = vsel %vm48, %v32, 0
    %v77 = vsel %vm48, %v33, 0
    %v80 = vsel %vm48, %v34, 0
    %v83 = vsel %vm48, %v35, 0
    %v86 = vsel %vm48, %v36, 0
    %v89 = vsel %vm48, %v37, 0
    %v92 = vsel %vm48, %v38, 0
    %v95 = vsel %vm48, %v39, 0
    %97 = vmatprep.subr.mxu0 0.0
    %98 = vmatpush1.msra.mxu0 %v40
    %99 = vmatprep.subr.mxu0 0.0
    %100 = vmatpush1.msra.mxu0 0.0
    %101 = vmatprep.subr.mxu0 0.0
    %102 = vmatpush1.msra.mxu0 0.0
    %103 = vmatprep.subr.mxu0 0.0
    %104 = vmatpush1.msra.mxu0 0.0
    %105 = vmatprep.subr.mxu0 0.0
    %106 = vmatpush1.msra.mxu0 0.0
    %107 = vmatprep.subr.mxu0 0.0
    %108 = vmatpush1.msra.mxu0 0.0
    %109 = vmatprep.subr.mxu0 0.0
    %110 = vmatpush1.msra.mxu0 0.0
    %111 = vmatprep.subr.mxu0 0.0
    %112 = vmatpush1.msra.mxu0 0.0
    %113 = vmatprep.subr.mxu0 0.0
    %114 = vmatpush1.msra.mxu0 0.0
    %115 = vmatprep.subr.mxu0 0.0
    %116 = vmatpush1.msra.mxu0 0.0
    %117 = vmatprep.subr.mxu0 0.0
    %118 = vmatpush1.msra.mxu0 0.0
    %119 = vmatprep.subr.mxu0 0.0
    %120 = vmatpush1.msra.mxu0 0.0
    %121 = vmatprep.subr.mxu0 0.0
    %122 = vmatpush1.msra.mxu0 0.0
    %123 = vmatprep.subr.mxu0 0.0
    %124 = vmatpush1.msra.mxu0 0.0
    %125 = vmatprep.subr.mxu0 0.0
    %126 = vmatpush1.msra.mxu0 0.0
    %127 = vmatprep.subr.mxu0 0.0
    %128 = vmatpush1.msra.mxu0 0.0
    %129 = vmatprep.subr.mxu0 0.0
    %130 = vmatpush1.msra.mxu0 0.0
    %131 = vmatprep.subr.mxu0 0.0
    %132 = vmatpush1.msra.mxu0 0.0
    %133 = vmatprep.subr.mxu0 0.0
    %134 = vmatpush1.msra.mxu0 0.0
    %135 = vmatprep.subr.mxu0 0.0
    %136 = vmatpush1.msra.mxu0 0.0
    %137 = vmatprep.subr.mxu0 0.0
    %138 = vmatpush1.msra.mxu0 0.0
    %139 = vmatprep.subr.mxu0 0.0
    %140 = vmatpush1.msra.mxu0 0.0
    %141 = vmatprep.subr.mxu0 0.0
    %142 = vmatpush1.msra.mxu0 0.0
    %143 = vmatprep.subr.mxu0 0.0
    %144 = vmatpush1.msra.mxu0 0.0
    %145 = vmatprep.subr.mxu0 0.0
    %146 = vmatpush1.msra.mxu0 0.0
    %147 = vmatprep.subr.mxu0 0.0
    %148 = vmatpush1.msra.mxu0 0.0
    %149 = vmatprep.subr.mxu0 0.0
    %150 = vmatpush1.msra.mxu0 0.0
    %151 = vmatprep.subr.mxu0 0.0
    %152 = vmatpush1.msra.mxu0 0.0
    %153 = vmatprep.subr.mxu0 0.0
    %154 = vmatpush1.msra.mxu0 0.0
    %155 = vmatprep.subr.mxu0 0.0
    %156 = vmatpush1.msra.mxu0 0.0
    %157 = vmatprep.subr.mxu0 0.0
    %158 = vmatpush1.msra.mxu0 0.0
    %159 = vmatprep.subr.mxu0 0.0
    %160 = vmatpush1.msra.mxu0 0.0
    %161 = vmatprep.mubr.f32.mxu0 0.0
    %162 = vmatmul.mubr.f32.gmra.mrb[0].mxu0 %v50
    %v163 = vpop.f32.mrb[0].mxu0
    %v164 = vadd.f32 %v46, %v163
    %v165 = vpop.f32.mrb[0].mxu0
    %166 = vmatprep.mubr.f32.mxu0 0.0
    %167 = vmatmul.mubr.f32.gmra.mrb[0].mxu0 %v53
    %v168 = vpop.f32.mrb[0].mxu0
    %v169 = vadd.f32 %v46, %v168
    %v170 = vpop.f32.mrb[0].mxu0
    %171 = vmatprep.mubr.f32.mxu0 0.0
    %172 = vmatmul.mubr.f32.gmra.mrb[0].mxu0 %v56
    %v173 = vpop.f32.mrb[0].mxu0
    %v174 = vadd.f32 %v46, %v173
    %v175 = vpop.f32.mrb[0].mxu0
    %176 = vmatprep.mubr.f32.mxu0 0.0
    %177 = vmatmul.mubr.f32.gmra.mrb[0].mxu0 %v59
    %v178 = vpop.f32.mrb[0].mxu0
    %v179 = vadd.f32 %v46, %v178
    %v180 = vpop.f32.mrb[0].mxu0
    %181 = vmatprep.mubr.f32.mxu0 0.0
    %182 = vmatmul.mubr.f32.gmra.mrb[0].mxu0 %v62
    %v183 = vpop.f32.mrb[0].mxu0
    %v184 = vadd.f32 %v46, %v183
    %v185 = vpop.f32.mrb[0].mxu0
    %186 = vmatprep.mubr.f32.mxu0 0.0
    %187 = vmatmul.mubr.f32.gmra.mrb[0].mxu0 %v65
    %v188 = vpop.f32.mrb[0].mxu0
    %v189 = vadd.f32 %v46, %v188
    %v190 = vpop.f32.mrb[0].mxu0
    %191 = vmatprep.mubr.f32.mxu0 0.0
    %192 = vmatmul.mubr.f32.gmra.mrb[0].mxu0 %v68
    %v193 = vpop.f32.mrb[0].mxu0
    %v194 = vadd.f32 %v46, %v193
    %v195 = vpop.f32.mrb[0].mxu0
    %196 = vmatprep.mubr.f32.mxu0 0.0
    %197 = vmatmul.mubr.f32.gmra.mrb[0].mxu0 %v71
    %v198 = vpop.f32.mrb[0].mxu0
    %v199 = vadd.f32 %v46, %v198
    %v200 = vpop.f32.mrb[0].mxu0
    %201 = vmatprep.mubr.f32.mxu0 0.0
    %202 = vmatmul.mubr.f32.gmra.mrb[0].mxu0 %v74
    %v203 = vpop.f32.mrb[0].mxu0
    %v204 = vadd.f32 %v46, %v203
    %v205 = vpop.f32.mrb[0].mxu0
    %206 = vmatprep.mubr.f32.mxu0 0.0
    %207 = vmatmul.mubr.f32.gmra.mrb[0].mxu0 %v77
    %v208 = vpop.f32.mrb[0].mxu0
    %v209 = vadd.f32 %v46, %v208
    %v210 = vpop.f32.mrb[0].mxu0
    %211 = vmatprep.mubr.f32.mxu0 0.0
    %212 = vmatmul.mubr.f32.gmra.mrb[0].mxu0 %v80
    %v213 = vpop.f32.mrb[0].mxu0
    %v214 = vadd.f32 %v46, %v213
    %v215 = vpop.f32.mrb[0].mxu0
    %216 = vmatprep.mubr.f32.mxu0 0.0
    %217 = vmatmul.mubr.f32.gmra.mrb[0].mxu0 %v83
    %v218 = vpop.f32.mrb[0].mxu0
    %v219 = vadd.f32 %v46, %v218
    %v220 = vpop.f32.mrb[0].mxu0
    %221 = vmatprep.mubr.f32.mxu0 0.0
    %222 = vmatmul.mubr.f32.gmra.mrb[0].mxu0 %v86
    %v223 = vpop.f32.mrb[0].mxu0
    %v224 = vadd.f32 %v46, %v223
    %v225 = vpop.f32.mrb[0].mxu0
    %226 = vmatprep.mubr.f32.mxu0 0.0
    %227 = vmatmul.mubr.f32.gmra.mrb[0].mxu0 %v89
    %v228 = vpop.f32.mrb[0].mxu0
    %v229 = vadd.f32 %v46, %v228
    %v230 = vpop.f32.mrb[0].mxu0
    %231 = vmatprep.mubr.f32.mxu0 0.0
    %232 = vmatmul.mubr.f32.gmra.mrb[0].mxu0 %v92
    %v233 = vpop.f32.mrb[0].mxu0
    %v234 = vadd.f32 %v46, %v233
    %v235 = vpop.f32.mrb[0].mxu0
    %236 = vmatprep.mubr.f32.mxu0 0.0
    %237 = vmatmul.mubr.f32.gmra.mrb[0].mxu0 %v95
    %v238 = vpop.f32.mrb[0].mxu0
    %v239 = vadd.f32 %v46, %v238
    %v240 = vpop.f32.mrb[0].mxu0
    %241 = vdwg.mxu0
    %v242 = vand.u32 2147483647, %v164
    %v243 = vand.u32 2147483647, %v169
    %v244 = vand.u32 2147483647, %v174
    %v245 = vand.u32 2147483647, %v179
    %v246 = vand.u32 2147483647, %v184
    %v247 = vand.u32 2147483647, %v189
    %v248 = vand.u32 2147483647, %v194
    %v249 = vand.u32 2147483647, %v199
    %v250 = vand.u32 2147483647, %v204
    %v251 = vand.u32 2147483647, %v209
    %v252 = vand.u32 2147483647, %v214
    %v253 = vand.u32 2147483647, %v219
    %v254 = vand.u32 2147483647, %v224
    %v255 = vand.u32 2147483647, %v229
    %v256 = vand.u32 2147483647, %v234
    %v257 = vand.u32 2147483647, %v239
    %v258 = vld [vmem:[%s3] sm:$0xff]
    %v259 = vld [vmem:[%s3 + $0x8] sm:$0xff]
    %v260 = vld [vmem:[%s3 + $0x10] sm:$0xff]
    %v261 = vld [vmem:[%s3 + $0x18] sm:$0xff]
    %v262 = vld [vmem:[%s3 + $0x20] sm:$0xff]
    %v263 = vld [vmem:[%s3 + $0x28] sm:$0xff]
    %v264 = vld [vmem:[%s3 + $0x30] sm:$0xff]
    %v265 = vld [vmem:[%s3 + $0x38] sm:$0xff]
    %v266 = vld [vmem:[%s3 + $0x40] sm:$0xff]
    %v267 = vld [vmem:[%s3 + $0x48] sm:$0xff]
    %v268 = vld [vmem:[%s3 + $0x50] sm:$0xff]
    %v269 = vld [vmem:[%s3 + $0x58] sm:$0xff]
    %v270 = vld [vmem:[%s3 + $0x60] sm:$0xff]
    %v271 = vld [vmem:[%s3 + $0x68] sm:$0xff]
    %v272 = vld [vmem:[%s3 + $0x70] sm:$0xff]
    %v273 = vld [vmem:[%s3 + $0x78] sm:$0xff]
    %v274 = vld [vmem:[%s4] sm:$0x1]
    %v276 = vlaneseq
    %v277 = vshrl.u32 %v276, 7
    %v278 = vsub.s32 0, %v277
    %v279 = vrot.slane %v274, %v278
    %281 = vmatprep.subr.mxu0 0.0
    %282 = vmatpush1.msra.mxu0 %v258
    %283 = vmatprep.subr.mxu0 0.0
    %284 = vmatpush1.msra.mxu0 %v259
    %285 = vmatprep.subr.mxu0 0.0
    %286 = vmatpush1.msra.mxu0 %v260
    %287 = vmatprep.subr.mxu0 0.0
    %288 = vmatpush1.msra.mxu0 %v261
    %289 = vmatprep.subr.mxu0 0.0
    %290 = vmatpush1.msra.mxu0 %v262
    %291 = vmatprep.subr.mxu0 0.0
    %292 = vmatpush1.msra.mxu0 %v263
    %293 = vmatprep.subr.mxu0 0.0
    %294 = vmatpush1.msra.mxu0 %v264
    %295 = vmatprep.subr.mxu0 0.0
    %296 = vmatpush1.msra.mxu0 %v265
    %297 = vmatprep.subr.mxu0 0.0
    %298 = vmatpush1.msra.mxu0 %v266
    %299 = vmatprep.subr.mxu0 0.0
    %300 = vmatpush1.msra.mxu0 %v267
    %301 = vmatprep.subr.mxu0 0.0
    %302 = vmatpush1.msra.mxu0 %v268
    %303 = vmatprep.subr.mxu0 0.0
    %304 = vmatpush1.msra.mxu0 %v269
    %305 = vmatprep.subr.mxu0 0.0
    %306 = vmatpush1.msra.mxu0 %v270
    %307 = vmatprep.subr.mxu0 0.0
    %308 = vmatpush1.msra.mxu0 %v271
    %309 = vmatprep.subr.mxu0 0.0
    %310 = vmatpush1.msra.mxu0 %v272
    %311 = vmatprep.subr.mxu0 0.0
    %312 = vmatpush1.msra.mxu0 %v273
    %313 = vmatprep.subr.mxu0 0.0
    %314 = vmatpush1.msra.mxu0 0.0
    %315 = vmatprep.subr.mxu0 0.0
    %316 = vmatpush1.msra.mxu0 0.0
    %317 = vmatprep.subr.mxu0 0.0
    %318 = vmatpush1.msra.mxu0 0.0
    %319 = vmatprep.subr.mxu0 0.0
    %320 = vmatpush1.msra.mxu0 0.0
    %321 = vmatprep.subr.mxu0 0.0
    %322 = vmatpush1.msra.mxu0 0.0
    %323 = vmatprep.subr.mxu0 0.0
    %324 = vmatpush1.msra.mxu0 0.0
    %325 = vmatprep.subr.mxu0 0.0
    %326 = vmatpush1.msra.mxu0 0.0
    %327 = vmatprep.subr.mxu0 0.0
    %328 = vmatpush1.msra.mxu0 0.0
    %329 = vmatprep.subr.mxu0 0.0
    %330 = vmatpush1.msra.mxu0 0.0
    %331 = vmatprep.subr.mxu0 0.0
    %332 = vmatpush1.msra.mxu0 0.0
    %333 = vmatprep.subr.mxu0 0.0
    %334 = vmatpush1.msra.mxu0 0.0
    %335 = vmatprep.subr.mxu0 0.0
    %336 = vmatpush1.msra.mxu0 0.0
    %337 = vmatprep.subr.mxu0 0.0
    %338 = vmatpush1.msra.mxu0 0.0
    %339 = vmatprep.subr.mxu0 0.0
    %340 = vmatpush1.msra.mxu0 0.0
    %341 = vmatprep.subr.mxu0 0.0
    %342 = vmatpush1.msra.mxu0 0.0
    %343 = vmatprep.subr.mxu0 0.0
    %344 = vmatpush1.msra.mxu0 0.0
    %345 = vmatprep.mubr.f32.mxu0 0.0
    %346 = vmatmul.mubr.f32.gmra.mrb[0].mxu0 %v242
    %v347 = vpop.f32.mrb[0].mxu0
    %v348 = vadd.f32 %v279, %v347
    %v349 = vpop.f32.mrb[0].mxu0
    %350 = vmatprep.mubr.f32.mxu0 0.0
    %351 = vmatmul.mubr.f32.gmra.mrb[0].mxu0 %v243
    %v352 = vpop.f32.mrb[0].mxu0
    %v353 = vadd.f32 %v279, %v352
    %v354 = vpop.f32.mrb[0].mxu0
    %355 = vmatprep.mubr.f32.mxu0 0.0
    %356 = vmatmul.mubr.f32.gmra.mrb[0].mxu0 %v244
    %v357 = vpop.f32.mrb[0].mxu0
    %v358 = vadd.f32 %v279, %v357
    %v359 = vpop.f32.mrb[0].mxu0
    %360 = vmatprep.mubr.f32.mxu0 0.0
    %361 = vmatmul.mubr.f32.gmra.mrb[0].mxu0 %v245
    %v362 = vpop.f32.mrb[0].mxu0
    %v363 = vadd.f32 %v279, %v362
    %v364 = vpop.f32.mrb[0].mxu0
    %365 = vmatprep.mubr.f32.mxu0 0.0
    %366 = vmatmul.mubr.f32.gmra.mrb[0].mxu0 %v246
    %v367 = vpop.f32.mrb[0].mxu0
    %v368 = vadd.f32 %v279, %v367
    %v369 = vpop.f32.mrb[0].mxu0
    %370 = vmatprep.mubr.f32.mxu0 0.0
    %371 = vmatmul.mubr.f32.gmra.mrb[0].mxu0 %v247
    %v372 = vpop.f32.mrb[0].mxu0
    %v373 = vadd.f32 %v279, %v372
    %v374 = vpop.f32.mrb[0].mxu0
    %375 = vmatprep.mubr.f32.mxu0 0.0
    %376 = vmatmul.mubr.f32.gmra.mrb[0].mxu0 %v248
    %v377 = vpop.f32.mrb[0].mxu0
    %v378 = vadd.f32 %v279, %v377
    %v379 = vpop.f32.mrb[0].mxu0
    %380 = vmatprep.mubr.f32.mxu0 0.0
    %381 = vmatmul.mubr.f32.gmra.mrb[0].mxu0 %v249
    %v382 = vpop.f32.mrb[0].mxu0
    %v383 = vadd.f32 %v279, %v382
    %v384 = vpop.f32.mrb[0].mxu0
    %385 = vmatprep.mubr.f32.mxu0 0.0
    %386 = vmatmul.mubr.f32.gmra.mrb[0].mxu0 %v250
    %v387 = vpop.f32.mrb[0].mxu0
    %v388 = vadd.f32 %v279, %v387
    %v389 = vpop.f32.mrb[0].mxu0
    %390 = vmatprep.mubr.f32.mxu0 0.0
    %391 = vmatmul.mubr.f32.gmra.mrb[0].mxu0 %v251
    %v392 = vpop.f32.mrb[0].mxu0
    %v393 = vadd.f32 %v279, %v392
    %v394 = vpop.f32.mrb[0].mxu0
    %395 = vmatprep.mubr.f32.mxu0 0.0
    %396 = vmatmul.mubr.f32.gmra.mrb[0].mxu0 %v252
    %v397 = vpop.f32.mrb[0].mxu0
    %v398 = vadd.f32 %v279, %v397
    %v399 = vpop.f32.mrb[0].mxu0
    %400 = vmatprep.mubr.f32.mxu0 0.0
    %401 = vmatmul.mubr.f32.gmra.mrb[0].mxu0 %v253
    %v402 = vpop.f32.mrb[0].mxu0
    %v403 = vadd.f32 %v279, %v402
    %v404 = vpop.f32.mrb[0].mxu0
    %405 = vmatprep.mubr.f32.mxu0 0.0
    %406 = vmatmul.mubr.f32.gmra.mrb[0].mxu0 %v254
    %v407 = vpop.f32.mrb[0].mxu0
    %v408 = vadd.f32 %v279, %v407
    %v409 = vpop.f32.mrb[0].mxu0
    %410 = vmatprep.mubr.f32.mxu0 0.0
    %411 = vmatmul.mubr.f32.gmra.mrb[0].mxu0 %v255
    %v412 = vpop.f32.mrb[0].mxu0
    %v413 = vadd.f32 %v279, %v412
    %v414 = vpop.f32.mrb[0].mxu0
    %415 = vmatprep.mubr.f32.mxu0 0.0
    %416 = vmatmul.mubr.f32.gmra.mrb[0].mxu0 %v256
    %v417 = vpop.f32.mrb[0].mxu0
    %v418 = vadd.f32 %v279, %v417
    %v419 = vpop.f32.mrb[0].mxu0
    %420 = vmatprep.mubr.f32.mxu0 0.0
    %421 = vmatmul.mubr.f32.gmra.mrb[0].mxu0 %v257
    %v422 = vpop.f32.mrb[0].mxu0
    %v423 = vadd.f32 %v279, %v422
    %v424 = vpop.f32.mrb[0].mxu0
    %425 = vdwg.mxu0
    %426 = vst [vmem:[#allocation4] sm:$0xff] %v348
    %427 = vst [vmem:[#allocation4 + $0x8] sm:$0xff] %v353
    %428 = vst [vmem:[#allocation4 + $0x10] sm:$0xff] %v358
    %429 = vst [vmem:[#allocation4 + $0x18] sm:$0xff] %v363
    %430 = vst [vmem:[#allocation4 + $0x20] sm:$0xff] %v368
    %431 = vst [vmem:[#allocation4 + $0x28] sm:$0xff] %v373
    %432 = vst [vmem:[#allocation4 + $0x30] sm:$0xff] %v378
    %433 = vst [vmem:[#allocation4 + $0x38] sm:$0xff] %v383
    %434 = vst [vmem:[#allocation4 + $0x40] sm:$0xff] %v388
    %435 = vst [vmem:[#allocation4 + $0x48] sm:$0xff] %v393
    %436 = vst [vmem:[#allocation4 + $0x50] sm:$0xff] %v398
    %437 = vst [vmem:[#allocation4 + $0x58] sm:$0xff] %v403
    %438 = vst [vmem:[#allocation4 + $0x60] sm:$0xff] %v408
    %439 = vst [vmem:[#allocation4 + $0x68] sm:$0xff] %v413
    %440 = vst [vmem:[#allocation4 + $0x70] sm:$0xff] %v418
    %441 = vst [vmem:[#allocation4 + $0x78] sm:$0xff] %v423
    %v442 = vpack.c.bf16 %v169, %v164
    %v443 = vpack.c.bf16 %v179, %v174
    %v444 = vpack.c.bf16 %v189, %v184
    %v445 = vpack.c.bf16 %v199, %v194
    %v446 = vpack.c.bf16 %v209, %v204
    %v447 = vpack.c.bf16 %v219, %v214
    %v448 = vpack.c.bf16 %v229, %v224
    %v449 = vpack.c.bf16 %v239, %v234
    %v458 = vunpack.c.l.b16 %v442
    %v459 = vunpack.c.h.b16 %v442
    %v460 = vunpack.c.l.b16 %v443
    %v461 = vunpack.c.h.b16 %v443
    %v462 = vunpack.c.l.b16 %v444
    %v463 = vunpack.c.h.b16 %v444
    %v464 = vunpack.c.l.b16 %v445
    %v465 = vunpack.c.h.b16 %v445
    %v466 = vunpack.c.l.b16 %v446
    %v467 = vunpack.c.h.b16 %v446
    %v468 = vunpack.c.l.b16 %v447
    %v469 = vunpack.c.h.b16 %v447
    %v470 = vunpack.c.l.b16 %v448
    %v471 = vunpack.c.h.b16 %v448
    %v472 = vunpack.c.l.b16 %v449
    %v473 = vunpack.c.h.b16 %v449
    %v474 = vpack.c.b16 %v458, %v458
    %v475 = vpack.c.b16 %v459, %v459
    %v476 = vpack.c.b16 %v460, %v460
    %v477 = vpack.c.b16 %v461, %v461
    %v478 = vpack.c.b16 %v462, %v462
    %v479 = vpack.c.b16 %v463, %v463
    %v480 = vpack.c.b16 %v464, %v464
    %v481 = vpack.c.b16 %v465, %v465
    %v482 = vpack.c.b16 %v466, %v466
    %v483 = vpack.c.b16 %v467, %v467
    %v484 = vpack.c.b16 %v468, %v468
    %v485 = vpack.c.b16 %v469, %v469
    %v486 = vpack.c.b16 %v470, %v470
    %v487 = vpack.c.b16 %v471, %v471
    %v488 = vpack.c.b16 %v472, %v472
    %v489 = vpack.c.b16 %v473, %v473
    %506 = vst [vmem:[#allocation2] sm:$0xf] %v474
    %507 = vst [vmem:[#allocation2 + $0x4] sm:$0xf] %v475
    %508 = vst [vmem:[#allocation2 + $0x8] sm:$0xf] %v476
    %509 = vst [vmem:[#allocation2 + $0xc] sm:$0xf] %v477
    %510 = vst [vmem:[#allocation2 + $0x10] sm:$0xf] %v478
    %511 = vst [vmem:[#allocation2 + $0x14] sm:$0xf] %v479
    %512 = vst [vmem:[#allocation2 + $0x18] sm:$0xf] %v480
    %513 = vst [vmem:[#allocation2 + $0x1c] sm:$0xf] %v481
    %514 = vst [vmem:[#allocation2 + $0x20] sm:$0xf] %v482
    %515 = vst [vmem:[#allocation2 + $0x24] sm:$0xf] %v483
    %516 = vst [vmem:[#allocation2 + $0x28] sm:$0xf] %v484
    %517 = vst [vmem:[#allocation2 + $0x2c] sm:$0xf] %v485
    %518 = vst [vmem:[#allocation2 + $0x30] sm:$0xf] %v486
    %519 = vst [vmem:[#allocation2 + $0x34] sm:$0xf] %v487
    %520 = vst [vmem:[#allocation2 + $0x38] sm:$0xf] %v488
    %521 = vst [vmem:[#allocation2 + $0x3c] sm:$0xf] %v489
    // Predicated region
    $region22: #{tpu_custom_call.1} parent=1 // pred_check
      _
    $region23: #{tpu_custom_call.1} parent=1 // pred_check_branch
      %523 = sbr.rel (0) target = $region25
    $region24: #{tpu_custom_call.1} parent=1 // pred_region
      %s525 = ssub.s32 1024, 1024
      %526 = vsyncadd [#allocation3], %s525
      %s527 = sshll.u32 [#allocation2], 4
      %s528 = int_to_ptr.vmem [resolvable:$true] %s527
      %533 = dma.vmem_to_hbm [thread:$0]  %s528, 1024, %s5, [#allocation3], 64, 64, 4
    $region25: #{tpu_custom_call.1} parent=1 // pred_fallthru
      _
    // Predicated region
    $region26: #{tpu_custom_call.1} parent=1 // pred_check
      _
    $region27: #{tpu_custom_call.1} parent=1 // pred_check_branch
      %535 = sbr.rel (0) target = $region29
    $region28: #{tpu_custom_call.1} parent=1 // pred_region
      %s537 = ssub.s32 2048, 2048
      %538 = vsyncadd [#allocation5], %s537
      %s539 = sshll.u32 [#allocation4], 4
      %s540 = int_to_ptr.vmem [resolvable:$true] %s539
      %545 = dma.vmem_to_hbm [thread:$0]  %s540, 2048, %s6, [#allocation5], 128, 128, 8
    $region29: #{tpu_custom_call.1} parent=1 // pred_fallthru
      _
    // Predicated region
    $region30: #{tpu_custom_call.1} parent=1 // pred_check
      _
    $region31: #{tpu_custom_call.1} parent=1 // pred_check_branch
      %547 = sbr.rel (0) target = $region33
    $region32: #{tpu_custom_call.1} parent=1 // pred_region
      %548 = dma.done [#allocation3], 1024
    $region33: #{tpu_custom_call.1} parent=1 // pred_fallthru
      _
    // Predicated region
    $region34: #{tpu_custom_call.1} parent=1 // pred_check
      _
    $region35: #{tpu_custom_call.1} parent=1 // pred_check_branch
      %550 = sbr.rel (0) target = $region37
    $region36: #{tpu_custom_call.1} parent=1 // pred_region
      %551 = dma.done [#allocation5], 2048
    $region37: #{tpu_custom_call.1} parent=1 // pred_fallthru
      _
    %552 = vsyncpa [#allocation3], 1
    %553 = vsyncpa [#allocation5], 1

</llo_original>
